<compile_context>
chip_gen: v7x
topology: tpu7x:2x2x1
jax: 0.10.0
libtpu: 0.0.40
codegen_flags: <defaults>
</compile_context>

<pallas_src>
import functools

import jax
import jax.numpy as jnp
import numpy as np
from jax import lax
from jax.experimental import pallas as pl
from jax.experimental.pallas import tpu as pltpu


# ---------------------------------------------------------------------------
# Pooling helper: kernel_size == stride pooling over the last dim of a value.
# Static loop over windows; contiguous lane slices + lane reduction (O(C*L) work).
# ---------------------------------------------------------------------------
def _pool_value(x, *, pooling, stride):
    # x: (C, L) f32 value
    C, L = x.shape
    Lout = L // stride
    cols = []
    for j in range(Lout):
        win = x[:, j * stride:(j + 1) * stride]          # (C, stride) contiguous slice
        if pooling == "avg_pool":
            cols.append(jnp.sum(win, axis=1, keepdims=True) * (1.0 / stride))
        else:
            cols.append(jnp.max(win, axis=1, keepdims=True))
    return cols[0] if Lout == 1 else jnp.concatenate(cols, axis=1)   # (C, Lout)


# ---------------------------------------------------------------------------
# Fused encoder-block kernel: conv stack (+ BN when the whole batch is resident)
# + ReLU + pooling, one batch tile per grid step, activations resident in VMEM.
# ---------------------------------------------------------------------------
def _encoder_kernel(*refs, no_layers, K, L, Bt, channels, use_norm, fuse_bn,
                    pooling, stride, eps, compute_dtype):
    # refs = x, (w_0, b_0), ..., (w_{n-1}, b_{n-1}), [gamma, beta], out_a, out_b, buf
    x_ref = refs[0]
    w_refs = [refs[1 + 2 * i] for i in range(no_layers)]
    b_refs = [refs[2 + 2 * i] for i in range(no_layers)]
    idx = 1 + 2 * no_layers
    if use_norm and fuse_bn:
        gamma_ref, beta_ref = refs[idx], refs[idx + 1]
        idx += 2
    out_a, out_b = refs[idx], refs[idx + 1]
    buf_ref = refs[idx + 2]                                   # (Bt, Cmax, L + 2*pad) scratch

    pad = K // 2
    Cin0 = channels[0]

    # Zero once (covers all halos for every layer), then write the input interior.
    buf_ref[...] = jnp.zeros_like(buf_ref)
    buf_ref[:, :Cin0, pad:pad + L] = x_ref[...].astype(compute_dtype)

    out = None
    for li in range(no_layers):
        cin, cout = channels[li], channels[li + 1]
        # Assemble the (K*cin, Bt*L) slab: batch folded into the lane (N) dimension.
        taps = []
        for k in range(K):
            rows = [buf_ref[i, :cin, k:k + L] for i in range(Bt)]     # each (cin, L)
            taps.append(rows[0] if Bt == 1 else jnp.concatenate(rows, axis=1))
        slab = taps[0] if K == 1 else jnp.concatenate(taps, axis=0)   # (K*cin, Bt*L)

        # Single MXU matmul per layer, f32 accumulation; bias added once afterwards.
        acc = jnp.dot(w_refs[li][...], slab, preferred_element_type=jnp.float32)
        acc = acc + b_refs[li][...].astype(jnp.float32)               # (cout, Bt*L)

        is_last = li == no_layers - 1
        if not (use_norm and is_last):
            acc = jnp.maximum(acc, 0.0)                               # ReLU

        if not is_last:
            vals = acc.astype(compute_dtype)
            for i in range(Bt):
                buf_ref[i, :cout, pad:pad + L] = vals[:, i * L:(i + 1) * L]
        else:
            out = acc                                                 # (Cout, Bt*L) f32

    Cout = channels[-1]

    if use_norm and not fuse_bn:
        # Two-call path: emit pre-BN activations + per-tile partial stats (f32).
        y_ref, stats_ref = out_a, out_b
        for i in range(Bt):
            y_ref[i] = out[:, i * L:(i + 1) * L].astype(y_ref.dtype)
        s1 = jnp.sum(out, axis=1, keepdims=True)                      # (Cout, 1)
        s2 = jnp.sum(out * out, axis=1, keepdims=True)                # (Cout, 1)
        stats_ref[0] = jnp.concatenate([s1, s2], axis=1)              # (Cout, 2)
        return

    if use_norm and fuse_bn:
        # Whole batch resident in this grid step -> BN batch stats computed in-kernel.
        n = Bt * L
        mean = jnp.sum(out, axis=1, keepdims=True) / n
        d = out - mean
        var = jnp.sum(d * d, axis=1, keepdims=True) / n               # biased (PyTorch norm.)
        out = d * lax.rsqrt(var + eps)
        out = out * gamma_ref[...].astype(jnp.float32) + beta_ref[...].astype(jnp.float32)
        out = jnp.maximum(out, 0.0)                                   # ReLU after BN

    x_out_ref, pooled_ref = out_a, out_b
    for i in range(Bt):
        xi = out[:, i * L:(i + 1) * L]                                # (Cout, L) f32
        x_out_ref[i] = xi.astype(x_out_ref.dtype)
        pooled_ref[i] = _pool_value(xi, pooling=pooling, stride=stride).astype(pooled_ref.dtype)


# ---------------------------------------------------------------------------
# Second kernel for the batch-tiled BN path: normalize + ReLU + pool in one pass.
# ---------------------------------------------------------------------------
def _bn_act_pool_kernel(y_ref, scale_ref, shift_ref, x_ref, pooled_ref, *, pooling, stride):
    y = y_ref[...].astype(jnp.float32)                                # (Bt, C, L)
    x = jnp.maximum(y * scale_ref[...] + shift_ref[...], 0.0)
    x_ref[...] = x.astype(x_ref.dtype)
    Bt = y_ref.shape[0]
    for i in range(Bt):
        pooled_ref[i] = _pool_value(x[i], pooling=pooling, stride=stride).astype(pooled_ref.dtype)


# ---------------------------------------------------------------------------
# encoder_block forward.
# ---------------------------------------------------------------------------
def encoder_block_forward(x, params, *, use_norm, pooling, pooling_stride,
                          batch_tile=None, compute_dtype=jnp.float32, eps=1e-5):
    B, Cin, L = x.shape
    conv_w, conv_b = params["conv_w"], params["conv_b"]
    no_layers = len(conv_w)
    K = conv_w[0].shape[2]
    pad = K // 2
    channels = [Cin] + [w.shape[0] for w in conv_w]
    Cout = channels[-1]
    Cmax = max(channels)
    Lp = L + 2 * pad
    Lout = L // pooling_stride

    Bt = B if batch_tile is None else batch_tile
    assert B % Bt == 0, "batch_tile must divide the batch size"
    nbt = B // Bt
    fuse_bn = use_norm and nbt == 1      # whole batch resident -> BN fully fused

    # One-time host prep: weights to (Cout, K*Cin) matmul form (k-major rows).
    w2 = [jnp.transpose(w, (0, 2, 1)).reshape(w.shape[0], K * w.shape[1]).astype(compute_dtype)
          for w in conv_w]
    b2 = [b.reshape(-1, 1).astype(jnp.float32) for b in conv_b]

    in_arrays = [x]
    in_specs = [pl.BlockSpec((Bt, Cin, L), lambda t: (t, 0, 0))]
    for wi, bi in zip(w2, b2):
        in_arrays += [wi, bi]
        in_specs += [pl.BlockSpec(wi.shape, lambda t: (0, 0)),
                     pl.BlockSpec(bi.shape, lambda t: (0, 0))]
    if fuse_bn:
        in_arrays += [params["bn_gamma"].reshape(Cout, 1).astype(jnp.float32),
                      params["bn_beta"].reshape(Cout, 1).astype(jnp.float32)]
        in_specs += [pl.BlockSpec((Cout, 1), lambda t: (0, 0)),
                     pl.BlockSpec((Cout, 1), lambda t: (0, 0))]

    if use_norm and not fuse_bn:
        out_shape = (jax.ShapeDtypeStruct((B, Cout, L), x.dtype),        # pre-BN activations
                     jax.ShapeDtypeStruct((nbt, Cout, 2), jnp.float32))  # per-tile (sum, sumsq)
        out_specs = (pl.BlockSpec((Bt, Cout, L), lambda t: (t, 0, 0)),
                     pl.BlockSpec((1, Cout, 2), lambda t: (t, 0, 0)))
    else:
        out_shape = (jax.ShapeDtypeStruct((B, Cout, L), x.dtype),
                     jax.ShapeDtypeStruct((B, Cout, Lout), x.dtype))
        out_specs = (pl.BlockSpec((Bt, Cout, L), lambda t: (t, 0, 0)),
                     pl.BlockSpec((Bt, Cout, Lout), lambda t: (t, 0, 0)))

    kern = functools.partial(
        _encoder_kernel, no_layers=no_layers, K=K, L=L, Bt=Bt, channels=tuple(channels),
        use_norm=use_norm, fuse_bn=fuse_bn, pooling=pooling, stride=pooling_stride,
        eps=eps, compute_dtype=compute_dtype)

    res = pl.pallas_call(
        kern,
        out_shape=out_shape,
        grid=(nbt,),
        in_specs=in_specs,
        out_specs=out_specs,
        scratch_shapes=[pltpu.VMEM((Bt, Cmax, Lp), compute_dtype)],
        compiler_params=pltpu.CompilerParams(dimension_semantics=("parallel",)),
    )(*in_arrays)

    if not (use_norm and not fuse_bn):
        x_out, pooled = res
        return x_out, pooled

    # Batch-tiled BN: tiny O(Cout) host reduction of per-tile stats, then one fused
    # BN + ReLU + pool kernel over the same batch tiles.
    y, stats = res
    n = B * L
    total = jnp.sum(stats, axis=0)                    # (Cout, 2)
    mean = total[:, 0] / n
    var = total[:, 1] / n - mean * mean               # biased variance (PyTorch normalization)
    scale = params["bn_gamma"] * lax.rsqrt(var + eps)
    shift = params["bn_beta"] - mean * scale

    x_out, pooled = pl.pallas_call(
        functools.partial(_bn_act_pool_kernel, pooling=pooling, stride=pooling_stride),
        out_shape=(jax.ShapeDtypeStruct((B, Cout, L), x.dtype),
                   jax.ShapeDtypeStruct((B, Cout, Lout), x.dtype)),
        grid=(nbt,),
        in_specs=[pl.BlockSpec((Bt, Cout, L), lambda t: (t, 0, 0)),
                  pl.BlockSpec((1, Cout, 1), lambda t: (0, 0, 0)),
                  pl.BlockSpec((1, Cout, 1), lambda t: (0, 0, 0))],
        out_specs=(pl.BlockSpec((Bt, Cout, L), lambda t: (t, 0, 0)),
                   pl.BlockSpec((Bt, Cout, Lout), lambda t: (t, 0, 0))),
        compiler_params=pltpu.CompilerParams(dimension_semantics=("parallel",)),
    )(y, scale.reshape(1, Cout, 1).astype(jnp.float32),
      shift.reshape(1, Cout, 1).astype(jnp.float32))
    return x_out, pooled


# ---------------------------------------------------------------------------
# Pure-JAX reference (for verification only).
# ---------------------------------------------------------------------------
def reference_forward(x, params, *, use_norm, pooling, pooling_stride):
    no_layers = len(params["conv_w"])
    for i in range(no_layers):
        w = params["conv_w"][i]
        b = params["conv_b"][i]
        pad = w.shape[2] // 2
        x = lax.conv_general_dilated(
            x, w, window_strides=(1,), padding=[(pad, pad)],
            dimension_numbers=("NCH", "OIH", "NCH"),
        ) + b[None, :, None]
        if use_norm and i == no_layers - 1:
            mean = jnp.mean(x, axis=(0, 2), keepdims=True)
            var = jnp.mean((x - mean) ** 2, axis=(0, 2), keepdims=True)
            x = (x - mean) * lax.rsqrt(var + 1e-5)
            x = x * params["bn_gamma"][None, :, None] + params["bn_beta"][None, :, None]
        x = jnp.maximum(x, 0.0)
    B, C, L = x.shape
    s = pooling_stride
    Lout = L // s
    xr = x[:, :, : Lout * s].reshape(B, C, Lout, s)
    pooled = jnp.mean(xr, -1) if pooling == "avg_pool" else jnp.max(xr, -1)
    return x, pooled


if __name__ == "__main__":
    # Module config (small, consistent with encoder_block.__init__)
    B, Cin, Cout, L = 2, 4, 8, 16
    K = 3
    no_layers = 2
    pooling_stride = 2

    key = jax.random.PRNGKey(0)
    channels = [Cin] + no_layers * [Cout]
    conv_w, conv_b = [], []
    for i in range(no_layers):
        key, k1, k2 = jax.random.split(key, 3)
        bound = 1.0 / np.sqrt(channels[i] * K)
        conv_w.append(jax.random.uniform(k1, (channels[i + 1], channels[i], K),
                                         jnp.float32, -bound, bound))
        conv_b.append(jax.random.uniform(k2, (channels[i + 1],),
                                         jnp.float32, -bound, bound))
    params = {
        "conv_w": conv_w,
        "conv_b": conv_b,
        "bn_gamma": jnp.ones((Cout,), jnp.float32),
        "bn_beta": jnp.zeros((Cout,), jnp.float32),
    }

    key, kx = jax.random.split(key)
    x = jax.random.normal(kx, (B, Cin, L), jnp.float32)

    configs = [
        # fully fused single kernel (whole batch per grid step), BN + max pool
        dict(use_norm=True, pooling="max_pool", batch_tile=None,
             compute_dtype=jnp.float32, tol=1e-4),
        # batch-tiled parallel grid (2 steps) -> conv+stats kernel + BN/ReLU/pool kernel
        dict(use_norm=True, pooling="max_pool", batch_tile=1,
             compute_dtype=jnp.float32, tol=1e-4),
        # no norm, avg pooling, fully fused per-batch kernel
        dict(use_norm=False, pooling="avg_pool", batch_tile=1,
             compute_dtype=jnp.float32, tol=1e-4),
        # bf16 matmul inputs (f32 accumulation / f32 BN stats), loose tolerance
        dict(use_norm=True, pooling="max_pool", batch_tile=None,
             compute_dtype=jnp.bfloat16, tol=1e-1),
    ]

    for cfg in configs:
        fwd = functools.partial(
            encoder_block_forward, use_norm=cfg["use_norm"], pooling=cfg["pooling"],
            pooling_stride=pooling_stride, batch_tile=cfg["batch_tile"],
            compute_dtype=cfg["compute_dtype"])
        out_x, out_pool = jax.jit(fwd)(x, params)
        jax.block_until_ready((out_x, out_pool))

        ref_x, ref_pool = reference_forward(
            x, params, use_norm=cfg["use_norm"], pooling=cfg["pooling"],
            pooling_stride=pooling_stride)

        assert out_x.shape == (B, Cout, L)
        assert out_pool.shape == (B, Cout, L // pooling_stride)
        np.testing.assert_allclose(np.asarray(out_x, dtype=np.float32), np.asarray(ref_x),
                                   atol=cfg["tol"], rtol=cfg["tol"])
        np.testing.assert_allclose(np.asarray(out_pool, dtype=np.float32), np.asarray(ref_pool),
                                   atol=cfg["tol"], rtol=cfg["tol"])

    print("KERNEL_OK")
</pallas_src>

<mosaic_0001>
module attributes {stable_mosaic.version = 11 : i64} {
  func.func @_encoder_kernel(%arg0: i32, %arg1: memref<2x4x16xf32, #tpu.memory_space<vmem>>, %arg2: memref<8x12xf32, #tpu.memory_space<vmem>>, %arg3: memref<8x1xf32, #tpu.memory_space<vmem>>, %arg4: memref<8x24xf32, #tpu.memory_space<vmem>>, %arg5: memref<8x1xf32, #tpu.memory_space<vmem>>, %arg6: memref<8x1xf32, #tpu.memory_space<vmem>>, %arg7: memref<8x1xf32, #tpu.memory_space<vmem>>, %arg8: memref<2x8x16xf32, #tpu.memory_space<vmem>>, %arg9: memref<2x8x8xf32, #tpu.memory_space<vmem>>, %arg10: memref<2x8x18xf32, #tpu.memory_space<vmem>>) attributes {dimension_semantics = [#tpu.dimension_semantics<parallel>], iteration_bounds = array<i64: 1>, scalar_prefetch = 0 : i64, scratch_operands = 1 : i64, tpu.core_type = #tpu.core_type<tc>, window_params = [{transform_indices = @transform_0, window_bounds = array<i64: 2, 4, 16>}, {pipeline_mode = #tpu.pipeline_mode<synchronous>, transform_indices = @transform_1, window_bounds = array<i64: 8, 12>}, {pipeline_mode = #tpu.pipeline_mode<synchronous>, transform_indices = @transform_2, window_bounds = array<i64: 8, 1>}, {pipeline_mode = #tpu.pipeline_mode<synchronous>, transform_indices = @transform_3, window_bounds = array<i64: 8, 24>}, {pipeline_mode = #tpu.pipeline_mode<synchronous>, transform_indices = @transform_4, window_bounds = array<i64: 8, 1>}, {pipeline_mode = #tpu.pipeline_mode<synchronous>, transform_indices = @transform_5, window_bounds = array<i64: 8, 1>}, {pipeline_mode = #tpu.pipeline_mode<synchronous>, transform_indices = @transform_6, window_bounds = array<i64: 8, 1>}, {transform_indices = @transform_7, window_bounds = array<i64: 2, 8, 16>}, {transform_indices = @transform_8, window_bounds = array<i64: 2, 8, 8>}]} {
    %cst = arith.constant 0.000000e+00 : f32
    %0 = vector.broadcast %cst : f32 to vector<2x8x18xf32>
    %c0 = arith.constant 0 : index
    %c0_0 = arith.constant 0 : index
    %c0_1 = arith.constant 0 : index
    %1 = vector.load %arg10[%c0, %c0_0, %c0_1] : memref<2x8x18xf32, #tpu.memory_space<vmem>>, vector<2x8x18xf32>
    tpu.vector_store %arg10[%c0, %c0_0, %c0_1], %0 {strides = array<i32>} : memref<2x8x18xf32, #tpu.memory_space<vmem>>, vector<2x8x18xf32>,
    %c0_2 = arith.constant 0 : index
    %c0_3 = arith.constant 0 : index
    %c0_4 = arith.constant 0 : index
    %2 = vector.load %arg1[%c0_2, %c0_3, %c0_4] : memref<2x4x16xf32, #tpu.memory_space<vmem>>, vector<2x4x16xf32>
    %c0_5 = arith.constant 0 : index
    %c0_6 = arith.constant 0 : index
    %c1 = arith.constant 1 : index
    %3 = vector.load %arg10[%c0_5, %c0_6, %c1] : memref<2x8x18xf32, #tpu.memory_space<vmem>>, vector<2x4x16xf32>
    tpu.vector_store %arg10[%c0_5, %c0_6, %c1], %2 {strides = array<i32>} : memref<2x8x18xf32, #tpu.memory_space<vmem>>, vector<2x4x16xf32>,
    %c0_7 = arith.constant 0 : index
    %c0_8 = arith.constant 0 : index
    %c0_9 = arith.constant 0 : index
    %4 = vector.load %arg10[%c0_7, %c0_8, %c0_9] : memref<2x8x18xf32, #tpu.memory_space<vmem>>, vector<1x4x16xf32>
    %5 = vector.shape_cast %4 : vector<1x4x16xf32> to vector<4x16xf32>
    %c1_10 = arith.constant 1 : index
    %c0_11 = arith.constant 0 : index
    %c0_12 = arith.constant 0 : index
    %6 = vector.load %arg10[%c1_10, %c0_11, %c0_12] : memref<2x8x18xf32, #tpu.memory_space<vmem>>, vector<1x4x16xf32>
    %7 = vector.shape_cast %6 : vector<1x4x16xf32> to vector<4x16xf32>
    %8 = tpu.concatenate %5, %7 in 1 : vector<4x16xf32>, vector<4x16xf32> -> vector<4x32xf32>
    %c0_13 = arith.constant 0 : index
    %c0_14 = arith.constant 0 : index
    %c1_15 = arith.constant 1 : index
    %9 = vector.load %arg10[%c0_13, %c0_14, %c1_15] : memref<2x8x18xf32, #tpu.memory_space<vmem>>, vector<1x4x16xf32>
    %10 = vector.shape_cast %9 : vector<1x4x16xf32> to vector<4x16xf32>
    %c1_16 = arith.constant 1 : index
    %c0_17 = arith.constant 0 : index
    %c1_18 = arith.constant 1 : index
    %11 = vector.load %arg10[%c1_16, %c0_17, %c1_18] : memref<2x8x18xf32, #tpu.memory_space<vmem>>, vector<1x4x16xf32>
    %12 = vector.shape_cast %11 : vector<1x4x16xf32> to vector<4x16xf32>
    %13 = tpu.concatenate %10, %12 in 1 : vector<4x16xf32>, vector<4x16xf32> -> vector<4x32xf32>
    %c0_19 = arith.constant 0 : index
    %c0_20 = arith.constant 0 : index
    %c2 = arith.constant 2 : index
    %14 = vector.load %arg10[%c0_19, %c0_20, %c2] : memref<2x8x18xf32, #tpu.memory_space<vmem>>, vector<1x4x16xf32>
    %15 = vector.shape_cast %14 : vector<1x4x16xf32> to vector<4x16xf32>
    %c1_21 = arith.constant 1 : index
    %c0_22 = arith.constant 0 : index
    %c2_23 = arith.constant 2 : index
    %16 = vector.load %arg10[%c1_21, %c0_22, %c2_23] : memref<2x8x18xf32, #tpu.memory_space<vmem>>, vector<1x4x16xf32>
    %17 = vector.shape_cast %16 : vector<1x4x16xf32> to vector<4x16xf32>
    %18 = tpu.concatenate %15, %17 in 1 : vector<4x16xf32>, vector<4x16xf32> -> vector<4x32xf32>
    %19 = tpu.concatenate %8, %13, %18 in 0 : vector<4x32xf32>, vector<4x32xf32>, vector<4x32xf32> -> vector<12x32xf32>
    %c0_24 = arith.constant 0 : index
    %c0_25 = arith.constant 0 : index
    %20 = vector.load %arg2[%c0_24, %c0_25] : memref<8x12xf32, #tpu.memory_space<vmem>>, vector<8x12xf32>
    %cst_26 = arith.constant dense<0.000000e+00> : vector<8x32xf32>
    %21 = tpu.matmul %20, %19, %cst_26 {dimension_numbers = #tpu.dot_dimension_numbers<[1], [0], [0], [1], [0, 0, 1, 1], [], []>} : vector<8x12xf32>, vector<12x32xf32>, vector<8x32xf32> -> vector<8x32xf32>
    %c0_27 = arith.constant 0 : index
    %c0_28 = arith.constant 0 : index
    %22 = vector.load %arg3[%c0_27, %c0_28] : memref<8x1xf32, #tpu.memory_space<vmem>>, vector<8x1xf32>
    %23 = vector.broadcast %22 : vector<8x1xf32> to vector<8x32xf32>
    %24 = arith.addf %21, %23 : vector<8x32xf32>
    %cst_29 = arith.constant 0.000000e+00 : f32
    %25 = vector.broadcast %cst_29 : f32 to vector<8x32xf32>
    %26 = arith.maximumf %24, %25 : vector<8x32xf32>
    %27 = vector.extract_strided_slice %26 {offsets = [0, 0], sizes = [8, 16], strides = [1, 1]} : vector<8x32xf32> to vector<8x16xf32>
    %c0_30 = arith.constant 0 : index
    %c0_31 = arith.constant 0 : index
    %c1_32 = arith.constant 1 : index
    %28 = vector.load %arg10[%c0_30, %c0_31, %c1_32] : memref<2x8x18xf32, #tpu.memory_space<vmem>>, vector<1x8x16xf32>
    %29 = vector.shape_cast %28 : vector<1x8x16xf32> to vector<8x16xf32>
    %30 = vector.shape_cast %27 : vector<8x16xf32> to vector<1x8x16xf32>
    tpu.vector_store %arg10[%c0_30, %c0_31, %c1_32], %30 {strides = array<i32>} : memref<2x8x18xf32, #tpu.memory_space<vmem>>, vector<1x8x16xf32>,
    %31 = vector.extract_strided_slice %26 {offsets = [0, 16], sizes = [8, 16], strides = [1, 1]} : vector<8x32xf32> to vector<8x16xf32>
    %c1_33 = arith.constant 1 : index
    %c0_34 = arith.constant 0 : index
    %c1_35 = arith.constant 1 : index
    %32 = vector.load %arg10[%c1_33, %c0_34, %c1_35] : memref<2x8x18xf32, #tpu.memory_space<vmem>>, vector<1x8x16xf32>
    %33 = vector.shape_cast %32 : vector<1x8x16xf32> to vector<8x16xf32>
    %34 = vector.shape_cast %31 : vector<8x16xf32> to vector<1x8x16xf32>
    tpu.vector_store %arg10[%c1_33, %c0_34, %c1_35], %34 {strides = array<i32>} : memref<2x8x18xf32, #tpu.memory_space<vmem>>, vector<1x8x16xf32>,
    %c0_36 = arith.constant 0 : index
    %c0_37 = arith.constant 0 : index
    %c0_38 = arith.constant 0 : index
    %35 = vector.load %arg10[%c0_36, %c0_37, %c0_38] : memref<2x8x18xf32, #tpu.memory_space<vmem>>, vector<1x8x16xf32>
    %36 = vector.shape_cast %35 : vector<1x8x16xf32> to vector<8x16xf32>
    %c1_39 = arith.constant 1 : index
    %c0_40 = arith.constant 0 : index
    %c0_41 = arith.constant 0 : index
    %37 = vector.load %arg10[%c1_39, %c0_40, %c0_41] : memref<2x8x18xf32, #tpu.memory_space<vmem>>, vector<1x8x16xf32>
    %38 = vector.shape_cast %37 : vector<1x8x16xf32> to vector<8x16xf32>
    %39 = tpu.concatenate %36, %38 in 1 : vector<8x16xf32>, vector<8x16xf32> -> vector<8x32xf32>
    %c0_42 = arith.constant 0 : index
    %c0_43 = arith.constant 0 : index
    %c1_44 = arith.constant 1 : index
    %40 = vector.load %arg10[%c0_42, %c0_43, %c1_44] : memref<2x8x18xf32, #tpu.memory_space<vmem>>, vector<1x8x16xf32>
    %41 = vector.shape_cast %40 : vector<1x8x16xf32> to vector<8x16xf32>
    %c1_45 = arith.constant 1 : index
    %c0_46 = arith.constant 0 : index
    %c1_47 = arith.constant 1 : index
    %42 = vector.load %arg10[%c1_45, %c0_46, %c1_47] : memref<2x8x18xf32, #tpu.memory_space<vmem>>, vector<1x8x16xf32>
    %43 = vector.shape_cast %42 : vector<1x8x16xf32> to vector<8x16xf32>
    %44 = tpu.concatenate %41, %43 in 1 : vector<8x16xf32>, vector<8x16xf32> -> vector<8x32xf32>
    %c0_48 = arith.constant 0 : index
    %c0_49 = arith.constant 0 : index
    %c2_50 = arith.constant 2 : index
    %45 = vector.load %arg10[%c0_48, %c0_49, %c2_50] : memref<2x8x18xf32, #tpu.memory_space<vmem>>, vector<1x8x16xf32>
    %46 = vector.shape_cast %45 : vector<1x8x16xf32> to vector<8x16xf32>
    %c1_51 = arith.constant 1 : index
    %c0_52 = arith.constant 0 : index
    %c2_53 = arith.constant 2 : index
    %47 = vector.load %arg10[%c1_51, %c0_52, %c2_53] : memref<2x8x18xf32, #tpu.memory_space<vmem>>, vector<1x8x16xf32>
    %48 = vector.shape_cast %47 : vector<1x8x16xf32> to vector<8x16xf32>
    %49 = tpu.concatenate %46, %48 in 1 : vector<8x16xf32>, vector<8x16xf32> -> vector<8x32xf32>
    %50 = tpu.concatenate %39, %44, %49 in 0 : vector<8x32xf32>, vector<8x32xf32>, vector<8x32xf32> -> vector<24x32xf32>
    %c0_54 = arith.constant 0 : index
    %c0_55 = arith.constant 0 : index
    %51 = vector.load %arg4[%c0_54, %c0_55] : memref<8x24xf32, #tpu.memory_space<vmem>>, vector<8x24xf32>
    %cst_56 = arith.constant dense<0.000000e+00> : vector<8x32xf32>
    %52 = tpu.matmul %51, %50, %cst_56 {dimension_numbers = #tpu.dot_dimension_numbers<[1], [0], [0], [1], [0, 0, 1, 1], [], []>} : vector<8x24xf32>, vector<24x32xf32>, vector<8x32xf32> -> vector<8x32xf32>
    %c0_57 = arith.constant 0 : index
    %c0_58 = arith.constant 0 : index
    %53 = vector.load %arg5[%c0_57, %c0_58] : memref<8x1xf32, #tpu.memory_space<vmem>>, vector<8x1xf32>
    %54 = vector.broadcast %53 : vector<8x1xf32> to vector<8x32xf32>
    %55 = arith.addf %52, %54 : vector<8x32xf32>
    %cst_59 = arith.constant dense<0.000000e+00> : vector<8xf32>
    %56 = vector.multi_reduction <add>, %55, %cst_59 [1] : vector<8x32xf32> to vector<8xf32>
    %57 = vector.shape_cast %56 : vector<8xf32> to vector<8x1xf32>
    %cst_60 = arith.constant 3.200000e+01 : f32
    %58 = vector.broadcast %cst_60 : f32 to vector<8x1xf32>
    %59 = arith.divf %57, %58 : vector<8x1xf32>
    %60 = vector.broadcast %59 : vector<8x1xf32> to vector<8x32xf32>
    %61 = arith.subf %55, %60 : vector<8x32xf32>
    %62 = arith.mulf %61, %61 : vector<8x32xf32>
    %cst_61 = arith.constant dense<0.000000e+00> : vector<8xf32>
    %63 = vector.multi_reduction <add>, %62, %cst_61 [1] : vector<8x32xf32> to vector<8xf32>
    %64 = vector.shape_cast %63 : vector<8xf32> to vector<8x1xf32>
    %cst_62 = arith.constant 3.200000e+01 : f32
    %65 = vector.broadcast %cst_62 : f32 to vector<8x1xf32>
    %66 = arith.divf %64, %65 : vector<8x1xf32>
    %cst_63 = arith.constant 9.99999974E-6 : f32
    %67 = vector.broadcast %cst_63 : f32 to vector<8x1xf32>
    %68 = arith.addf %66, %67 : vector<8x1xf32>
    %69 = math.rsqrt %68 : vector<8x1xf32>
    %70 = vector.broadcast %69 : vector<8x1xf32> to vector<8x32xf32>
    %71 = arith.mulf %61, %70 : vector<8x32xf32>
    %c0_64 = arith.constant 0 : index
    %c0_65 = arith.constant 0 : index
    %72 = vector.load %arg6[%c0_64, %c0_65] : memref<8x1xf32, #tpu.memory_space<vmem>>, vector<8x1xf32>
    %73 = vector.broadcast %72 : vector<8x1xf32> to vector<8x32xf32>
    %74 = arith.mulf %71, %73 : vector<8x32xf32>
    %c0_66 = arith.constant 0 : index
    %c0_67 = arith.constant 0 : index
    %75 = vector.load %arg7[%c0_66, %c0_67] : memref<8x1xf32, #tpu.memory_space<vmem>>, vector<8x1xf32>
    %76 = vector.broadcast %75 : vector<8x1xf32> to vector<8x32xf32>
    %77 = arith.addf %74, %76 : vector<8x32xf32>
    %cst_68 = arith.constant 0.000000e+00 : f32
    %78 = vector.broadcast %cst_68 : f32 to vector<8x32xf32>
    %79 = arith.maximumf %77, %78 : vector<8x32xf32>
    %80 = vector.extract_strided_slice %79 {offsets = [0, 0], sizes = [8, 16], strides = [1, 1]} : vector<8x32xf32> to vector<8x16xf32>
    %c0_69 = arith.constant 0 : index
    %c0_70 = arith.constant 0 : index
    %c0_71 = arith.constant 0 : index
    %81 = vector.load %arg8[%c0_69, %c0_70, %c0_71] : memref<2x8x16xf32, #tpu.memory_space<vmem>>, vector<1x8x16xf32>
    %82 = vector.shape_cast %81 : vector<1x8x16xf32> to vector<8x16xf32>
    %83 = vector.shape_cast %80 : vector<8x16xf32> to vector<1x8x16xf32>
    tpu.vector_store %arg8[%c0_69, %c0_70, %c0_71], %83 {strides = array<i32>} : memref<2x8x16xf32, #tpu.memory_space<vmem>>, vector<1x8x16xf32>,
    %84 = vector.extract_strided_slice %80 {offsets = [0, 0], sizes = [8, 2], strides = [1, 1]} : vector<8x16xf32> to vector<8x2xf32>
    %cst_72 = arith.constant dense<0xFF800000> : vector<8xf32>
    %85 = vector.multi_reduction <maximumf>, %84, %cst_72 [1] : vector<8x2xf32> to vector<8xf32>
    %86 = vector.shape_cast %85 : vector<8xf32> to vector<8x1xf32>
    %87 = vector.extract_strided_slice %80 {offsets = [0, 2], sizes = [8, 2], strides = [1, 1]} : vector<8x16xf32> to vector<8x2xf32>
    %cst_73 = arith.constant dense<0xFF800000> : vector<8xf32>
    %88 = vector.multi_reduction <maximumf>, %87, %cst_73 [1] : vector<8x2xf32> to vector<8xf32>
    %89 = vector.shape_cast %88 : vector<8xf32> to vector<8x1xf32>
    %90 = vector.extract_strided_slice %80 {offsets = [0, 4], sizes = [8, 2], strides = [1, 1]} : vector<8x16xf32> to vector<8x2xf32>
    %cst_74 = arith.constant dense<0xFF800000> : vector<8xf32>
    %91 = vector.multi_reduction <maximumf>, %90, %cst_74 [1] : vector<8x2xf32> to vector<8xf32>
    %92 = vector.shape_cast %91 : vector<8xf32> to vector<8x1xf32>
    %93 = vector.extract_strided_slice %80 {offsets = [0, 6], sizes = [8, 2], strides = [1, 1]} : vector<8x16xf32> to vector<8x2xf32>
    %cst_75 = arith.constant dense<0xFF800000> : vector<8xf32>
    %94 = vector.multi_reduction <maximumf>, %93, %cst_75 [1] : vector<8x2xf32> to vector<8xf32>
    %95 = vector.shape_cast %94 : vector<8xf32> to vector<8x1xf32>
    %96 = vector.extract_strided_slice %80 {offsets = [0, 8], sizes = [8, 2], strides = [1, 1]} : vector<8x16xf32> to vector<8x2xf32>
    %cst_76 = arith.constant dense<0xFF800000> : vector<8xf32>
    %97 = vector.multi_reduction <maximumf>, %96, %cst_76 [1] : vector<8x2xf32> to vector<8xf32>
    %98 = vector.shape_cast %97 : vector<8xf32> to vector<8x1xf32>
    %99 = vector.extract_strided_slice %80 {offsets = [0, 10], sizes = [8, 2], strides = [1, 1]} : vector<8x16xf32> to vector<8x2xf32>
    %cst_77 = arith.constant dense<0xFF800000> : vector<8xf32>
    %100 = vector.multi_reduction <maximumf>, %99, %cst_77 [1] : vector<8x2xf32> to vector<8xf32>
    %101 = vector.shape_cast %100 : vector<8xf32> to vector<8x1xf32>
    %102 = vector.extract_strided_slice %80 {offsets = [0, 12], sizes = [8, 2], strides = [1, 1]} : vector<8x16xf32> to vector<8x2xf32>
    %cst_78 = arith.constant dense<0xFF800000> : vector<8xf32>
    %103 = vector.multi_reduction <maximumf>, %102, %cst_78 [1] : vector<8x2xf32> to vector<8xf32>
    %104 = vector.shape_cast %103 : vector<8xf32> to vector<8x1xf32>
    %105 = vector.extract_strided_slice %80 {offsets = [0, 14], sizes = [8, 2], strides = [1, 1]} : vector<8x16xf32> to vector<8x2xf32>
    %cst_79 = arith.constant dense<0xFF800000> : vector<8xf32>
    %106 = vector.multi_reduction <maximumf>, %105, %cst_79 [1] : vector<8x2xf32> to vector<8xf32>
    %107 = vector.shape_cast %106 : vector<8xf32> to vector<8x1xf32>
    %108 = tpu.concatenate %86, %89, %92, %95, %98, %101, %104, %107 in 1 : vector<8x1xf32>, vector<8x1xf32>, vector<8x1xf32>, vector<8x1xf32>, vector<8x1xf32>, vector<8x1xf32>, vector<8x1xf32>, vector<8x1xf32> -> vector<8x8xf32>
    %c0_80 = arith.constant 0 : index
    %c0_81 = arith.constant 0 : index
    %c0_82 = arith.constant 0 : index
    %109 = vector.load %arg9[%c0_80, %c0_81, %c0_82] : memref<2x8x8xf32, #tpu.memory_space<vmem>>, vector<1x8x8xf32>
    %110 = vector.shape_cast %109 : vector<1x8x8xf32> to vector<8x8xf32>
    %111 = vector.shape_cast %108 : vector<8x8xf32> to vector<1x8x8xf32>
    tpu.vector_store %arg9[%c0_80, %c0_81, %c0_82], %111 {strides = array<i32>} : memref<2x8x8xf32, #tpu.memory_space<vmem>>, vector<1x8x8xf32>,
    %112 = vector.extract_strided_slice %79 {offsets = [0, 16], sizes = [8, 16], strides = [1, 1]} : vector<8x32xf32> to vector<8x16xf32>
    %c1_83 = arith.constant 1 : index
    %c0_84 = arith.constant 0 : index
    %c0_85 = arith.constant 0 : index
    %113 = vector.load %arg8[%c1_83, %c0_84, %c0_85] : memref<2x8x16xf32, #tpu.memory_space<vmem>>, vector<1x8x16xf32>
    %114 = vector.shape_cast %113 : vector<1x8x16xf32> to vector<8x16xf32>
    %115 = vector.shape_cast %112 : vector<8x16xf32> to vector<1x8x16xf32>
    tpu.vector_store %arg8[%c1_83, %c0_84, %c0_85], %115 {strides = array<i32>} : memref<2x8x16xf32, #tpu.memory_space<vmem>>, vector<1x8x16xf32>,
    %116 = vector.extract_strided_slice %112 {offsets = [0, 0], sizes = [8, 2], strides = [1, 1]} : vector<8x16xf32> to vector<8x2xf32>
    %cst_86 = arith.constant dense<0xFF800000> : vector<8xf32>
    %117 = vector.multi_reduction <maximumf>, %116, %cst_86 [1] : vector<8x2xf32> to vector<8xf32>
    %118 = vector.shape_cast %117 : vector<8xf32> to vector<8x1xf32>
    %119 = vector.extract_strided_slice %112 {offsets = [0, 2], sizes = [8, 2], strides = [1, 1]} : vector<8x16xf32> to vector<8x2xf32>
    %cst_87 = arith.constant dense<0xFF800000> : vector<8xf32>
    %120 = vector.multi_reduction <maximumf>, %119, %cst_87 [1] : vector<8x2xf32> to vector<8xf32>
    %121 = vector.shape_cast %120 : vector<8xf32> to vector<8x1xf32>
    %122 = vector.extract_strided_slice %112 {offsets = [0, 4], sizes = [8, 2], strides = [1, 1]} : vector<8x16xf32> to vector<8x2xf32>
    %cst_88 = arith.constant dense<0xFF800000> : vector<8xf32>
    %123 = vector.multi_reduction <maximumf>, %122, %cst_88 [1] : vector<8x2xf32> to vector<8xf32>
    %124 = vector.shape_cast %123 : vector<8xf32> to vector<8x1xf32>
    %125 = vector.extract_strided_slice %112 {offsets = [0, 6], sizes = [8, 2], strides = [1, 1]} : vector<8x16xf32> to vector<8x2xf32>
    %cst_89 = arith.constant dense<0xFF800000> : vector<8xf32>
    %126 = vector.multi_reduction <maximumf>, %125, %cst_89 [1] : vector<8x2xf32> to vector<8xf32>
    %127 = vector.shape_cast %126 : vector<8xf32> to vector<8x1xf32>
    %128 = vector.extract_strided_slice %112 {offsets = [0, 8], sizes = [8, 2], strides = [1, 1]} : vector<8x16xf32> to vector<8x2xf32>
    %cst_90 = arith.constant dense<0xFF800000> : vector<8xf32>
    %129 = vector.multi_reduction <maximumf>, %128, %cst_90 [1] : vector<8x2xf32> to vector<8xf32>
    %130 = vector.shape_cast %129 : vector<8xf32> to vector<8x1xf32>
    %131 = vector.extract_strided_slice %112 {offsets = [0, 10], sizes = [8, 2], strides = [1, 1]} : vector<8x16xf32> to vector<8x2xf32>
    %cst_91 = arith.constant dense<0xFF800000> : vector<8xf32>
    %132 = vector.multi_reduction <maximumf>, %131, %cst_91 [1] : vector<8x2xf32> to vector<8xf32>
    %133 = vector.shape_cast %132 : vector<8xf32> to vector<8x1xf32>
    %134 = vector.extract_strided_slice %112 {offsets = [0, 12], sizes = [8, 2], strides = [1, 1]} : vector<8x16xf32> to vector<8x2xf32>
    %cst_92 = arith.constant dense<0xFF800000> : vector<8xf32>
    %135 = vector.multi_reduction <maximumf>, %134, %cst_92 [1] : vector<8x2xf32> to vector<8xf32>
    %136 = vector.shape_cast %135 : vector<8xf32> to vector<8x1xf32>
    %137 = vector.extract_strided_slice %112 {offsets = [0, 14], sizes = [8, 2], strides = [1, 1]} : vector<8x16xf32> to vector<8x2xf32>
    %cst_93 = arith.constant dense<0xFF800000> : vector<8xf32>
    %138 = vector.multi_reduction <maximumf>, %137, %cst_93 [1] : vector<8x2xf32> to vector<8xf32>
    %139 = vector.shape_cast %138 : vector<8xf32> to vector<8x1xf32>
    %140 = tpu.concatenate %118, %121, %124, %127, %130, %133, %136, %139 in 1 : vector<8x1xf32>, vector<8x1xf32>, vector<8x1xf32>, vector<8x1xf32>, vector<8x1xf32>, vector<8x1xf32>, vector<8x1xf32>, vector<8x1xf32> -> vector<8x8xf32>
    %c1_94 = arith.constant 1 : index
    %c0_95 = arith.constant 0 : index
    %c0_96 = arith.constant 0 : index
    %141 = vector.load %arg9[%c1_94, %c0_95, %c0_96] : memref<2x8x8xf32, #tpu.memory_space<vmem>>, vector<1x8x8xf32>
    %142 = vector.shape_cast %141 : vector<1x8x8xf32> to vector<8x8xf32>
    %143 = vector.shape_cast %140 : vector<8x8xf32> to vector<1x8x8xf32>
    tpu.vector_store %arg9[%c1_94, %c0_95, %c0_96], %143 {strides = array<i32>} : memref<2x8x8xf32, #tpu.memory_space<vmem>>, vector<1x8x8xf32>,
    return
  }
  func.func @transform_0(%arg0: i32) -> (i32, i32, i32) {
    %c0_i32 = arith.constant 0 : i32
    %c0_i32_0 = arith.constant 0 : i32
    %c0_i32_1 = arith.constant 0 : i32
    return %arg0, %c0_i32, %c0_i32_0 : i32, i32, i32
  }
  func.func @transform_1(%arg0: i32) -> (i32, i32) {
    %c0_i32 = arith.constant 0 : i32
    %c0_i32_0 = arith.constant 0 : i32
    %c0_i32_1 = arith.constant 0 : i32
    return %c0_i32, %c0_i32_0 : i32, i32
  }
  func.func @transform_2(%arg0: i32) -> (i32, i32) {
    %c0_i32 = arith.constant 0 : i32
    %c0_i32_0 = arith.constant 0 : i32
    %c0_i32_1 = arith.constant 0 : i32
    return %c0_i32, %c0_i32_0 : i32, i32
  }
  func.func @transform_3(%arg0: i32) -> (i32, i32) {
    %c0_i32 = arith.constant 0 : i32
    %c0_i32_0 = arith.constant 0 : i32
    %c0_i32_1 = arith.constant 0 : i32
    return %c0_i32, %c0_i32_0 : i32, i32
  }
  func.func @transform_4(%arg0: i32) -> (i32, i32) {
    %c0_i32 = arith.constant 0 : i32
    %c0_i32_0 = arith.constant 0 : i32
    %c0_i32_1 = arith.constant 0 : i32
    return %c0_i32, %c0_i32_0 : i32, i32
  }
  func.func @transform_5(%arg0: i32) -> (i32, i32) {
    %c0_i32 = arith.constant 0 : i32
    %c0_i32_0 = arith.constant 0 : i32
    %c0_i32_1 = arith.constant 0 : i32
    return %c0_i32, %c0_i32_0 : i32, i32
  }
  func.func @transform_6(%arg0: i32) -> (i32, i32) {
    %c0_i32 = arith.constant 0 : i32
    %c0_i32_0 = arith.constant 0 : i32
    %c0_i32_1 = arith.constant 0 : i32
    return %c0_i32, %c0_i32_0 : i32, i32
  }
  func.func @transform_7(%arg0: i32) -> (i32, i32, i32) {
    %c0_i32 = arith.constant 0 : i32
    %c0_i32_0 = arith.constant 0 : i32
    %c0_i32_1 = arith.constant 0 : i32
    return %arg0, %c0_i32, %c0_i32_0 : i32, i32, i32
  }
  func.func @transform_8(%arg0: i32) -> (i32, i32, i32) {
    %c0_i32 = arith.constant 0 : i32
    %c0_i32_0 = arith.constant 0 : i32
    %c0_i32_1 = arith.constant 0 : i32
    return %arg0, %c0_i32, %c0_i32_0 : i32, i32, i32
  }
}

</mosaic_0001>

<llo_original>
// kernel: encoder_block_forward.1
$region0: #{encoder_block_forward.1}
  #allocation0 [shape = 'u32[]', space=smem, size = 0x4, offset = 0x4, fixed_abs, tag = 'smem constant byte address 0x4 - core index']
  #allocation1 [shape = 'u32[144,128]{1,0:T(1,128)}', space=vmem, size = 0x12000, scoped, tag = 'internal scratch']
  #allocation2 [shape = 'f32[2,8,18]{2,1,0:T(8,128)}', space=vmem, size = 0x2000, scoped, tag = 'scratch operand']
  %s0 = inlined_call_operand.vmem [shape: f32[2,4,16], index: 0, kind: input, shape index: {}]
  %s1 = inlined_call_operand.vmem [shape: f32[8,12], index: 1, kind: input, shape index: {}]
  %s2 = inlined_call_operand.vmem [shape: f32[8,1], index: 2, kind: input, shape index: {}]
  %s3 = inlined_call_operand.vmem [shape: f32[8,24], index: 3, kind: input, shape index: {}]
  %s4 = inlined_call_operand.vmem [shape: f32[8,1], index: 4, kind: input, shape index: {}]
  %s5 = inlined_call_operand.vmem [shape: f32[8,1], index: 5, kind: input, shape index: {}]
  %s6 = inlined_call_operand.vmem [shape: f32[8,1], index: 6, kind: input, shape index: {}]
  %s7 = inlined_call_operand.hbm [shape: f32[2,8,16], index: 7, kind: output, shape index: {0}]
  %s8 = inlined_call_operand.hbm [shape: f32[2,8,8], index: 8, kind: output, shape index: {1}]
  %9 = xla_tuple %s7, %s8
  %s10 = sld [smem:[#allocation0]]
  $region46: #{encoder_block_forward.1} parent=0
    _
  %s12 = ssub.s32 1, %s10
  %s13 = scalar_select 0, %s12, %s10
  $region1: #{encoder_block_forward.1} parent=0
    #allocation3 [shape = 'u8[8192]{0}', space=vmem, size = 0x2000, scoped, tag = 'output window, operand 0, single buffered']
    #allocation4 [shape = 's32[1]{0}', space=sflag, size = 0x4, scoped, tag = 'scoped memory for encoder_block_forward.1']
    #allocation5 [shape = 'u8[8192]{0}', space=vmem, size = 0x2000, scoped, tag = 'output window, operand 1, single buffered']
    #allocation6 [shape = 's32[1]{0}', space=sflag, size = 0x4, scoped, tag = 'scoped memory for encoder_block_forward.1']
    %14 = vsyncpa [#allocation4], 0
    %15 = vsyncpa [#allocation6], 0
    // Predicated region
    $region2: #{encoder_block_forward.1} parent=1 // pred_check
      _
    $region3: #{encoder_block_forward.1} parent=1 // pred_check_branch
      %17 = sbr.rel (0) target = $region5
    $region4: #{encoder_block_forward.1} parent=1 // pred_region
      _
    $region5: #{encoder_block_forward.1} parent=1 // pred_fallthru
      _
    // Predicated region
    $region6: #{encoder_block_forward.1} parent=1 // pred_check
      _
    $region7: #{encoder_block_forward.1} parent=1 // pred_check_branch
      %19 = sbr.rel (0) target = $region9
    $region8: #{encoder_block_forward.1} parent=1 // pred_region
      _
    $region9: #{encoder_block_forward.1} parent=1 // pred_fallthru
      _
    // Predicated region
    $region10: #{encoder_block_forward.1} parent=1 // pred_check
      _
    $region11: #{encoder_block_forward.1} parent=1 // pred_check_branch
      %21 = sbr.rel (0) target = $region13
    $region12: #{encoder_block_forward.1} parent=1 // pred_region
      _
    $region13: #{encoder_block_forward.1} parent=1 // pred_fallthru
      _
    // Predicated region
    $region14: #{encoder_block_forward.1} parent=1 // pred_check
      _
    $region15: #{encoder_block_forward.1} parent=1 // pred_check_branch
      %23 = sbr.rel (0) target = $region17
    $region16: #{encoder_block_forward.1} parent=1 // pred_region
      _
    $region17: #{encoder_block_forward.1} parent=1 // pred_fallthru
      _
    // Predicated region
    $region18: #{encoder_block_forward.1} parent=1 // pred_check
      _
    $region19: #{encoder_block_forward.1} parent=1 // pred_check_branch
      %25 = sbr.rel (0) target = $region21
    $region20: #{encoder_block_forward.1} parent=1 // pred_region
      _
    $region21: #{encoder_block_forward.1} parent=1 // pred_fallthru
      _
    // Predicated region
    $region22: #{encoder_block_forward.1} parent=1 // pred_check
      _
    $region23: #{encoder_block_forward.1} parent=1 // pred_check_branch
      %27 = sbr.rel (0) target = $region25
    $region24: #{encoder_block_forward.1} parent=1 // pred_region
      _
    $region25: #{encoder_block_forward.1} parent=1 // pred_fallthru
      _
    // Predicated region
    $region26: #{encoder_block_forward.1} parent=1 // pred_check
      _
    $region27: #{encoder_block_forward.1} parent=1 // pred_check_branch
      %29 = sbr.rel (0) target = $region29
    $region28: #{encoder_block_forward.1} parent=1 // pred_region
      _
    $region29: #{encoder_block_forward.1} parent=1 // pred_fallthru
      _
    %vm30 = vcmask 146432
    %31 = vst.msk [vmem:[#allocation2] sm:$0xff] %vm30, 0.0
    %32 = vst.msk [vmem:[#allocation2 + $0x8] sm:$0xff] %vm30, 0.0
    %v33 = vld [vmem:[%s0] sm:$0xf]
    %v34 = vld [vmem:[%s0 + $0x4] sm:$0xf]
    %37 = vrot.lane.b32.xlu0 %v33, 1
    %v38 = vpop.permute.xlu0 %37
    %39 = vrot.lane.b32.xlu0 %v34, 1
    %v40 = vpop.permute.xlu0 %39
    %vm43 = vcmask 134152
    %44 = vst.msk [vmem:[#allocation2] sm:$0xf] %vm43, %v38
    %45 = vst.msk [vmem:[#allocation2 + $0x8] sm:$0xf] %vm43, %v40
    %v46 = vld [vmem:[#allocation2] sm:$0xf]
    %s47 = scalar_lea.vmem [#allocation2], 8
    %v48 = vld [vmem:[%s47] sm:$0xf]
    %50 = vrot.lane.b32.xlu0 %v48, 16
    %v51 = vpop.permute.xlu0 %50
    %vm53 = vcmask 130048
    %v54 = vsel %vm53, %v46, %v51
    %56 = vrot.lane.b32.xlu0 %v46, 127
    %v57 = vpop.permute.xlu0 %56
    %59 = vrot.lane.b32.xlu0 %v48, 15
    %v60 = vpop.permute.xlu0 %59
    %v62 = vsel %vm53, %v57, %v60
    %63 = vrot.lane.b32.xlu0 %v46, 126
    %v64 = vpop.permute.xlu0 %63
    %66 = vrot.lane.b32.xlu0 %v48, 14
    %v67 = vpop.permute.xlu0 %66
    %v69 = vsel %vm53, %v64, %v67
    %v71 = vrot.slane %v62, 4
    %vm73 = vcmask 1043456
    %v74 = vsel %vm73, %v54, %v71
    %v75 = vld [vmem:[%s1] sm:$0xff]
    %v76 = vld [vmem:[%s2] sm:$0xff]
    %78 = vset.pattern.permute.xlu0 0
    %79 = vperm.xlu0 %78, %v76
    %v80 = vpop.permute.xlu0 %79
    %vm82 = vcmask 97280
    %v84 = vsel %vm82, %v75, 0
    %v87 = vsel %vm73, %v69, 0
    %89 = vmatprep.subr.mxu0 0.0
    %90 = vmatpush1.msra.mxu0 %v74
    %91 = vmatprep.subr.mxu0 0.0
    %92 = vmatpush1.msra.mxu0 %v87
    %93 = vmatprep.subr.mxu0 0.0
    %94 = vmatpush1.msra.mxu0 0.0
    %95 = vmatprep.subr.mxu0 0.0
    %96 = vmatpush1.msra.mxu0 0.0
    %97 = vmatprep.subr.mxu0 0.0
    %98 = vmatpush1.msra.mxu0 0.0
    %99 = vmatprep.subr.mxu0 0.0
    %100 = vmatpush1.msra.mxu0 0.0
    %101 = vmatprep.subr.mxu0 0.0
    %102 = vmatpush1.msra.mxu0 0.0
    %103 = vmatprep.subr.mxu0 0.0
    %104 = vmatpush1.msra.mxu0 0.0
    %105 = vmatprep.subr.mxu0 0.0
    %106 = vmatpush1.msra.mxu0 0.0
    %107 = vmatprep.subr.mxu0 0.0
    %108 = vmatpush1.msra.mxu0 0.0
    %109 = vmatprep.subr.mxu0 0.0
    %110 = vmatpush1.msra.mxu0 0.0
    %111 = vmatprep.subr.mxu0 0.0
    %112 = vmatpush1.msra.mxu0 0.0
    %113 = vmatprep.subr.mxu0 0.0
    %114 = vmatpush1.msra.mxu0 0.0
    %115 = vmatprep.subr.mxu0 0.0
    %116 = vmatpush1.msra.mxu0 0.0
    %117 = vmatprep.subr.mxu0 0.0
    %118 = vmatpush1.msra.mxu0 0.0
    %119 = vmatprep.subr.mxu0 0.0
    %120 = vmatpush1.msra.mxu0 0.0
    %121 = vmatprep.subr.mxu0 0.0
    %122 = vmatpush1.msra.mxu0 0.0
    %123 = vmatprep.subr.mxu0 0.0
    %124 = vmatpush1.msra.mxu0 0.0
    %125 = vmatprep.subr.mxu0 0.0
    %126 = vmatpush1.msra.mxu0 0.0
    %127 = vmatprep.subr.mxu0 0.0
    %128 = vmatpush1.msra.mxu0 0.0
    %129 = vmatprep.subr.mxu0 0.0
    %130 = vmatpush1.msra.mxu0 0.0
    %131 = vmatprep.subr.mxu0 0.0
    %132 = vmatpush1.msra.mxu0 0.0
    %133 = vmatprep.subr.mxu0 0.0
    %134 = vmatpush1.msra.mxu0 0.0
    %135 = vmatprep.subr.mxu0 0.0
    %136 = vmatpush1.msra.mxu0 0.0
    %137 = vmatprep.subr.mxu0 0.0
    %138 = vmatpush1.msra.mxu0 0.0
    %139 = vmatprep.subr.mxu0 0.0
    %140 = vmatpush1.msra.mxu0 0.0
    %141 = vmatprep.subr.mxu0 0.0
    %142 = vmatpush1.msra.mxu0 0.0
    %143 = vmatprep.subr.mxu0 0.0
    %144 = vmatpush1.msra.mxu0 0.0
    %145 = vmatprep.subr.mxu0 0.0
    %146 = vmatpush1.msra.mxu0 0.0
    %147 = vmatprep.subr.mxu0 0.0
    %148 = vmatpush1.msra.mxu0 0.0
    %149 = vmatprep.subr.mxu0 0.0
    %150 = vmatpush1.msra.mxu0 0.0
    %151 = vmatprep.subr.mxu0 0.0
    %152 = vmatpush1.msra.mxu0 0.0
    %153 = vmatprep.mubr.f32.mxu0 0.0
    %154 = vmatmul.mubr.f32.gmra.mrb[0].mxu0 %v84
    %v155 = vpop.f32.mrb[0].mxu0
    %v156 = vadd.f32 %v80, %v155
    %v157 = vpop.f32.mrb[0].mxu0
    %158 = vdwg.mxu0
    %v159 = vmax.f32 %v156, 0.0
    %161 = vrot.lane.b32.xlu0 %v159, 1
    %v162 = vpop.permute.xlu0 %161
    %vm164 = vcmask 138248
    %165 = vst.msk [vmem:[#allocation2] sm:$0xff] %vm164, %v162
    %166 = vrot.lane.b32.xlu0 %v159, 113
    %v167 = vpop.permute.xlu0 %166
    %169 = vst.msk [vmem:[%s47] sm:$0xff] %vm164, %v167
    %v170 = vld [vmem:[#allocation2] sm:$0xff]
    %v171 = vld [vmem:[%s47] sm:$0xff]
    %173 = vrot.lane.b32.xlu0 %v171, 16
    %v174 = vpop.permute.xlu0 %173
    %v176 = vsel %vm53, %v170, %v174
    %178 = vrot.lane.b32.xlu0 %v170, 127
    %v179 = vpop.permute.xlu0 %178
    %181 = vrot.lane.b32.xlu0 %v171, 15
    %v182 = vpop.permute.xlu0 %181
    %v184 = vsel %vm53, %v179, %v182
    %185 = vrot.lane.b32.xlu0 %v170, 126
    %v186 = vpop.permute.xlu0 %185
    %188 = vrot.lane.b32.xlu0 %v171, 14
    %v189 = vpop.permute.xlu0 %188
    %v191 = vsel %vm53, %v186, %v189
    %v192 = vld [vmem:[%s3] sm:$0xff]
    %v193 = vld [vmem:[%s4] sm:$0xff]
    %195 = vset.pattern.permute.xlu0 0
    %196 = vperm.xlu0 %195, %v193
    %v197 = vpop.permute.xlu0 %196
    %vm199 = vcmask 195584
    %v201 = vsel %vm199, %v192, 0
    %203 = vmatprep.subr.mxu0 0.0
    %204 = vmatpush1.msra.mxu0 %v176
    %205 = vmatprep.subr.mxu0 0.0
    %206 = vmatpush1.msra.mxu0 %v184
    %207 = vmatprep.subr.mxu0 0.0
    %208 = vmatpush1.msra.mxu0 %v191
    %209 = vmatprep.subr.mxu0 0.0
    %210 = vmatpush1.msra.mxu0 0.0
    %211 = vmatprep.subr.mxu0 0.0
    %212 = vmatpush1.msra.mxu0 0.0
    %213 = vmatprep.subr.mxu0 0.0
    %214 = vmatpush1.msra.mxu0 0.0
    %215 = vmatprep.subr.mxu0 0.0
    %216 = vmatpush1.msra.mxu0 0.0
    %217 = vmatprep.subr.mxu0 0.0
    %218 = vmatpush1.msra.mxu0 0.0
    %219 = vmatprep.subr.mxu0 0.0
    %220 = vmatpush1.msra.mxu0 0.0
    %221 = vmatprep.subr.mxu0 0.0
    %222 = vmatpush1.msra.mxu0 0.0
    %223 = vmatprep.subr.mxu0 0.0
    %224 = vmatpush1.msra.mxu0 0.0
    %225 = vmatprep.subr.mxu0 0.0
    %226 = vmatpush1.msra.mxu0 0.0
    %227 = vmatprep.subr.mxu0 0.0
    %228 = vmatpush1.msra.mxu0 0.0
    %229 = vmatprep.subr.mxu0 0.0
    %230 = vmatpush1.msra.mxu0 0.0
    %231 = vmatprep.subr.mxu0 0.0
    %232 = vmatpush1.msra.mxu0 0.0
    %233 = vmatprep.subr.mxu0 0.0
    %234 = vmatpush1.msra.mxu0 0.0
    %235 = vmatprep.subr.mxu0 0.0
    %236 = vmatpush1.msra.mxu0 0.0
    %237 = vmatprep.subr.mxu0 0.0
    %238 = vmatpush1.msra.mxu0 0.0
    %239 = vmatprep.subr.mxu0 0.0
    %240 = vmatpush1.msra.mxu0 0.0
    %241 = vmatprep.subr.mxu0 0.0
    %242 = vmatpush1.msra.mxu0 0.0
    %243 = vmatprep.subr.mxu0 0.0
    %244 = vmatpush1.msra.mxu0 0.0
    %245 = vmatprep.subr.mxu0 0.0
    %246 = vmatpush1.msra.mxu0 0.0
    %247 = vmatprep.subr.mxu0 0.0
    %248 = vmatpush1.msra.mxu0 0.0
    %249 = vmatprep.subr.mxu0 0.0
    %250 = vmatpush1.msra.mxu0 0.0
    %251 = vmatprep.subr.mxu0 0.0
    %252 = vmatpush1.msra.mxu0 0.0
    %253 = vmatprep.subr.mxu0 0.0
    %254 = vmatpush1.msra.mxu0 0.0
    %255 = vmatprep.subr.mxu0 0.0
    %256 = vmatpush1.msra.mxu0 0.0
    %257 = vmatprep.subr.mxu0 0.0
    %258 = vmatpush1.msra.mxu0 0.0
    %259 = vmatprep.subr.mxu0 0.0
    %260 = vmatpush1.msra.mxu0 0.0
    %261 = vmatprep.subr.mxu0 0.0
    %262 = vmatpush1.msra.mxu0 0.0
    %263 = vmatprep.subr.mxu0 0.0
    %264 = vmatpush1.msra.mxu0 0.0
    %265 = vmatprep.subr.mxu0 0.0
    %266 = vmatpush1.msra.mxu0 0.0
    %267 = vmatprep.mubr.f32.mxu0 0.0
    %268 = vmatmul.mubr.f32.gmra.mrb[0].mxu0 %v201
    %v269 = vpop.f32.mrb[0].mxu0
    %v270 = vadd.f32 %v197, %v269
    %v271 = vpop.f32.mrb[0].mxu0
    %272 = vdwg.mxu0
    %vm273 = vcmask 261120
    %v274 = vsel %vm273, %v270, 0.0
    %275 = vadd.xlane.f32.xlu0 %v274
    %v276 = vpop.xlane.xlu0 %275
    %v277 = vrcp.pop 32.0
    %v278 = vmul.f32 %v276, %v277
    %v279 = vsub.f32 %v270, %v278
    %v280 = vmul.f32 %v279, %v279
    %v281 = vsel %vm273, %v280, 0.0
    %282 = vadd.xlane.f32.xlu0 %v281
    %v283 = vpop.xlane.xlu0 %282
    %v284 = vmul.f32 %v283, %v277
    %v285 = vadd.f32 %v284, 1e-05
    %v286 = vrsqrt.pop %v285
    %v287 = vmul.f32 %v279, %v286
    %v288 = vld [vmem:[%s5] sm:$0xff]
    %290 = vset.pattern.permute.xlu0 0
    %291 = vperm.xlu0 %290, %v288
    %v292 = vpop.permute.xlu0 %291
    %v294 = vmul.f32 %v287, %v292
    %v295 = vld [vmem:[%s6] sm:$0xff]
    %297 = vset.pattern.permute.xlu0 0
    %298 = vperm.xlu0 %297, %v295
    %v299 = vpop.permute.xlu0 %298
    %v301 = vadd.f32 %v294, %v299
    %v302 = vmax.f32 %v301, 0.0
    %303 = vst.msk [vmem:[#allocation3] sm:$0xff] %vm53, %v302
    %vm304 = vcmask 15360
    %v305 = vsel %vm304, %v302, -inf
    %306 = vmax.xlane.f32.xlu0 %v305
    %v307 = vpop.xlane.xlu0 %306
    %vm308 = vcmask 31760
    %v309 = vsel %vm308, %v302, -inf
    %310 = vmax.xlane.f32.xlu0 %v309
    %v311 = vpop.xlane.xlu0 %310
    %vm312 = vcmask 48160
    %v313 = vsel %vm312, %v302, -inf
    %314 = vmax.xlane.f32.xlu0 %v313
    %v315 = vpop.xlane.xlu0 %314
    %vm316 = vcmask 64560
    %v317 = vsel %vm316, %v302, -inf
    %318 = vmax.xlane.f32.xlu0 %v317
    %v319 = vpop.xlane.xlu0 %318
    %vm320 = vcmask 80960
    %v321 = vsel %vm320, %v302, -inf
    %322 = vmax.xlane.f32.xlu0 %v321
    %v323 = vpop.xlane.xlu0 %322
    %vm324 = vcmask 97360
    %v325 = vsel %vm324, %v302, -inf
    %326 = vmax.xlane.f32.xlu0 %v325
    %v327 = vpop.xlane.xlu0 %326
    %vm328 = vcmask 113760
    %v329 = vsel %vm328, %v302, -inf
    %330 = vmax.xlane.f32.xlu0 %v329
    %v331 = vpop.xlane.xlu0 %330
    %vm332 = vcmask 130160
    %v333 = vsel %vm332, %v302, -inf
    %334 = vmax.xlane.f32.xlu0 %v333
    %v335 = vpop.xlane.xlu0 %334
    %vm336 = vcmask 7168
    %v337 = vsel %vm336, %v307, %v311
    %v338 = vsel %vm304, %v337, %v315
    %vm339 = vcmask 23552
    %v340 = vsel %vm339, %v338, %v319
    %vm341 = vcmask 31744
    %v342 = vsel %vm341, %v340, %v323
    %vm343 = vcmask 39936
    %v344 = vsel %vm343, %v342, %v327
    %vm345 = vcmask 48128
    %v346 = vsel %vm345, %v344, %v331
    %vm347 = vcmask 56320
    %v348 = vsel %vm347, %v346, %v335
    %vm349 = vcmask 64512
    %350 = vst.msk [vmem:[#allocation5] sm:$0xff] %vm349, %v348
    %352 = vrot.lane.b32.xlu0 %v302, 112
    %v353 = vpop.permute.xlu0 %352
    %s355 = scalar_lea.vmem [#allocation3], 8
    %356 = vst.msk [vmem:[%s355] sm:$0xff] %vm53, %v353
    %vm357 = vcmask 146560
    %v358 = vsel %vm357, %v302, -inf
    %359 = vmax.xlane.f32.xlu0 %v358
    %v360 = vpop.xlane.xlu0 %359
    %vm361 = vcmask 162960
    %v362 = vsel %vm361, %v302, -inf
    %363 = vmax.xlane.f32.xlu0 %v362
    %v364 = vpop.xlane.xlu0 %363
    %vm365 = vcmask 179360
    %v366 = vsel %vm365, %v302, -inf
    %367 = vmax.xlane.f32.xlu0 %v366
    %v368 = vpop.xlane.xlu0 %367
    %vm369 = vcmask 195760
    %v370 = vsel %vm369, %v302, -inf
    %371 = vmax.xlane.f32.xlu0 %v370
    %v372 = vpop.xlane.xlu0 %371
    %vm373 = vcmask 212160
    %v374 = vsel %vm373, %v302, -inf
    %375 = vmax.xlane.f32.xlu0 %v374
    %v376 = vpop.xlane.xlu0 %375
    %vm377 = vcmask 228560
    %v378 = vsel %vm377, %v302, -inf
    %379 = vmax.xlane.f32.xlu0 %v378
    %v380 = vpop.xlane.xlu0 %379
    %vm381 = vcmask 244960
    %v382 = vsel %vm381, %v302, -inf
    %383 = vmax.xlane.f32.xlu0 %v382
    %v384 = vpop.xlane.xlu0 %383
    %vm385 = vcmask 261360
    %v386 = vsel %vm385, %v302, -inf
    %387 = vmax.xlane.f32.xlu0 %v386
    %v388 = vpop.xlane.xlu0 %387
    %v389 = vsel %vm336, %v360, %v364
    %v390 = vsel %vm304, %v389, %v368
    %v391 = vsel %vm339, %v390, %v372
    %v392 = vsel %vm341, %v391, %v376
    %v393 = vsel %vm343, %v392, %v380
    %v394 = vsel %vm345, %v393, %v384
    %v395 = vsel %vm347, %v394, %v388
    %s396 = scalar_lea.vmem [#allocation5], 8
    %397 = vst.msk [vmem:[%s396] sm:$0xff] %vm349, %v395
    // Predicated region
    $region30: #{encoder_block_forward.1} parent=1 // pred_check
      _
    $region31: #{encoder_block_forward.1} parent=1 // pred_check_branch
      %399 = sbr.rel (0) target = $region33
    $region32: #{encoder_block_forward.1} parent=1 // pred_region
      %s401 = ssub.s32 256, 256
      %402 = vsyncadd [#allocation4], %s401
      %s403 = sshll.u32 [#allocation3], 4
      %s404 = int_to_ptr.vmem [resolvable:$true] %s403
      %409 = dma.vmem_to_hbm [thread:$0]  %s404, 256, %s7, [#allocation4], 128, 128, 8
    $region33: #{encoder_block_forward.1} parent=1 // pred_fallthru
      _
    // Predicated region
    $region34: #{encoder_block_forward.1} parent=1 // pred_check
      _
    $region35: #{encoder_block_forward.1} parent=1 // pred_check_branch
      %411 = sbr.rel (0) target = $region37
    $region36: #{encoder_block_forward.1} parent=1 // pred_region
      %s413 = ssub.s32 256, 256
      %414 = vsyncadd [#allocation6], %s413
      %s415 = sshll.u32 [#allocation5], 4
      %s416 = int_to_ptr.vmem [resolvable:$true] %s415
      %421 = dma.vmem_to_hbm [thread:$0]  %s416, 256, %s8, [#allocation6], 128, 128, 8
    $region37: #{encoder_block_forward.1} parent=1 // pred_fallthru
      _
    // Predicated region
    $region38: #{encoder_block_forward.1} parent=1 // pred_check
      _
    $region39: #{encoder_block_forward.1} parent=1 // pred_check_branch
      %423 = sbr.rel (0) target = $region41
    $region40: #{encoder_block_forward.1} parent=1 // pred_region
      %424 = dma.done [#allocation4], 256
    $region41: #{encoder_block_forward.1} parent=1 // pred_fallthru
      _
    // Predicated region
    $region42: #{encoder_block_forward.1} parent=1 // pred_check
      _
    $region43: #{encoder_block_forward.1} parent=1 // pred_check_branch
      %426 = sbr.rel (0) target = $region45
    $region44: #{encoder_block_forward.1} parent=1 // pred_region
      %427 = dma.done [#allocation6], 256
    $region45: #{encoder_block_forward.1} parent=1 // pred_fallthru
      _
    %428 = vsyncpa [#allocation4], 1
    %429 = vsyncpa [#allocation6], 1

</llo_original>
